<compile_context>
chip_gen: v5e
topology: v5e:2x2
jax: 0.10.0
libtpu: 0.0.40
codegen_flags: <defaults>
</compile_context>

<pallas_src>
import functools

import jax
import jax.numpy as jnp
from jax.experimental import pallas as pl
from jax.experimental.pallas import tpu as pltpu


# --------------------------------------------------------------------------------------
# Shared in-kernel conv + bias + ReLU (single MXU matmul with K taps stacked on C_in).
# --------------------------------------------------------------------------------------
def _conv_bias_relu(x, w_flat, bias_f32, *, pad, dilation, kernel_size, l_out):
    """x: (C_in, L) native dtype; w_flat: (C_out, K*C_in); bias_f32: (C_out, 1) f32."""
    l_in = x.shape[-1]
    if pad > 0:
        # reflect 'same' padding, built in VMEM (only `pad` columns per side):
        #   left[j]  = x[:, pad - j]      (j = 0 .. pad-1)
        #   right[j] = x[:, L - 2 - j]
        left = [x[:, pad - j: pad - j + 1] for j in range(pad)]
        right = [x[:, l_in - 2 - j: l_in - 1 - j] for j in range(pad)]
        x = jnp.concatenate(left + [x] + right, axis=1)          # (C_in, L + 2*pad)

    # stack the K dilated taps along the channel (sublane) axis -> one MXU matmul with
    # contraction depth K*C_in instead of K matmuls of depth C_in.
    taps = [x[:, k * dilation: k * dilation + l_out] for k in range(kernel_size)]
    xs = taps[0] if kernel_size == 1 else jnp.concatenate(taps, axis=0)  # (K*C_in, L_out)

    acc = jnp.dot(w_flat, xs,
                  preferred_element_type=jnp.float32,
                  precision=jax.lax.Precision.DEFAULT)           # (C_out, L_out) f32
    return jnp.maximum(acc + bias_f32, 0.0)


# --------------------------------------------------------------------------------------
# Pass 1: per-batch partial statistics (sum, centered M2) of ReLU(conv(x)).
# --------------------------------------------------------------------------------------
def _stats_kernel(x_ref, w_ref, b_ref, sum_ref, m2_ref, *,
                  pad, dilation, kernel_size, l_out):
    y = _conv_bias_relu(x_ref[0], w_ref[...], b_ref[...].astype(jnp.float32),
                        pad=pad, dilation=dilation, kernel_size=kernel_size,
                        l_out=l_out)                             # (C_out, L_out) f32
    s = jnp.sum(y, axis=1, keepdims=True)                        # (C_out, 1)
    mean_b = s * (1.0 / l_out)
    d = y - mean_b
    sum_ref[0] = s
    m2_ref[0] = jnp.sum(d * d, axis=1, keepdims=True)            # centered partial


# --------------------------------------------------------------------------------------
# Pass 2: recompute conv + bias + ReLU and apply the folded batch-norm FMA.
# --------------------------------------------------------------------------------------
def _normalize_kernel(x_ref, w_ref, b_ref, scale_ref, shift_ref, out_ref, *,
                      pad, dilation, kernel_size, l_out):
    y = _conv_bias_relu(x_ref[0], w_ref[...], b_ref[...].astype(jnp.float32),
                        pad=pad, dilation=dilation, kernel_size=kernel_size,
                        l_out=l_out)
    out_ref[0] = (y * scale_ref[...] + shift_ref[...]).astype(out_ref.dtype)


# --------------------------------------------------------------------------------------
# Wrapper
# --------------------------------------------------------------------------------------
def tdnn_block(x, weight, bias, gamma, beta, *, kernel_size, dilation, eps=1e-5):
    """x: (B, C_in, L); weight: (C_out, C_in, K); bias/gamma/beta: (C_out,)."""
    B, C_in, L = x.shape
    C_out = weight.shape[0]
    K = kernel_size

    # speechbrain-style 'same' padding (stride == 1 branch), reflect mode
    l_same = L - dilation * (K - 1)
    pad = (L - l_same) // 2
    L_out = L + 2 * pad - dilation * (K - 1)

    # (C_out, K*C_in): column block k matches weight[:, :, k], consistent with the
    # in-kernel tap stacking order.
    w_flat = jnp.transpose(weight, (0, 2, 1)).reshape(C_out, K * C_in)
    bias2d = bias.reshape(C_out, 1)

    stats_kernel = functools.partial(_stats_kernel, pad=pad, dilation=dilation,
                                     kernel_size=K, l_out=L_out)
    norm_kernel = functools.partial(_normalize_kernel, pad=pad, dilation=dilation,
                                    kernel_size=K, l_out=L_out)

    # ---- pass 1: per-batch partial statistics (no y HBM round-trip) -----------------
    bsum, bm2 = pl.pallas_call(
        stats_kernel,
        out_shape=(jax.ShapeDtypeStruct((B, C_out, 1), jnp.float32),
                   jax.ShapeDtypeStruct((B, C_out, 1), jnp.float32)),
        grid=(B,),
        in_specs=[
            pl.BlockSpec((1, C_in, L), lambda b: (b, 0, 0)),
            pl.BlockSpec((C_out, K * C_in), lambda b: (0, 0)),
            pl.BlockSpec((C_out, 1), lambda b: (0, 0)),
        ],
        out_specs=(
            pl.BlockSpec((1, C_out, 1), lambda b: (b, 0, 0)),
            pl.BlockSpec((1, C_out, 1), lambda b: (b, 0, 0)),
        ),
        compiler_params=pltpu.CompilerParams(dimension_semantics=("parallel",)),
    )(x, w_flat, bias2d)

    # ---- combine partials (Chan/Welford merge; tiny XLA op) and fold BN into FMA ----
    n_b = jnp.float32(L_out)
    n_tot = jnp.float32(B * L_out)
    mean_b = bsum[:, :, 0] / n_b                                 # (B, C_out)
    mean = jnp.mean(mean_b, axis=0)                              # (C_out,)
    m2 = jnp.sum(bm2[:, :, 0], axis=0) \
        + n_b * jnp.sum(jnp.square(mean_b - mean[None, :]), axis=0)
    var = m2 / n_tot                                             # biased variance
    inv_std = jax.lax.rsqrt(var + jnp.float32(eps))
    scale = (gamma.astype(jnp.float32) * inv_std).reshape(C_out, 1)
    shift = (beta.astype(jnp.float32)
             - mean * gamma.astype(jnp.float32) * inv_std).reshape(C_out, 1)

    # ---- pass 2: recompute conv + ReLU and apply scale/shift, fully parallel --------
    out = pl.pallas_call(
        norm_kernel,
        out_shape=jax.ShapeDtypeStruct((B, C_out, L_out), x.dtype),
        grid=(B,),
        in_specs=[
            pl.BlockSpec((1, C_in, L), lambda b: (b, 0, 0)),
            pl.BlockSpec((C_out, K * C_in), lambda b: (0, 0)),
            pl.BlockSpec((C_out, 1), lambda b: (0, 0)),
            pl.BlockSpec((C_out, 1), lambda b: (0, 0)),
            pl.BlockSpec((C_out, 1), lambda b: (0, 0)),
        ],
        out_specs=pl.BlockSpec((1, C_out, L_out), lambda b: (b, 0, 0)),
        compiler_params=pltpu.CompilerParams(dimension_semantics=("parallel",)),
    )(x, w_flat, bias2d, scale, shift)
    return out


# --------------------------------------------------------------------------------------
# Pure-JAX reference mirroring the PyTorch module (full-f32, HIGHEST precision)
# --------------------------------------------------------------------------------------
def _reference_tdnn_block(x, weight, bias, gamma, beta, *, kernel_size, dilation,
                          eps=1e-5):
    B, C_in, L = x.shape
    K = kernel_size
    l_same = (L - dilation * (K - 1) - 1) // 1 + 1
    pad = (L - l_same) // 2
    x_pad = jnp.pad(x, ((0, 0), (0, 0), (pad, pad)), mode="reflect")
    y = jax.lax.conv_general_dilated(
        x_pad.astype(jnp.float32), weight.astype(jnp.float32),
        window_strides=(1,), padding="VALID", rhs_dilation=(dilation,),
        dimension_numbers=("NCH", "OIH", "NCH"),
        precision=jax.lax.Precision.HIGHEST)
    y = jnp.maximum(y + bias.reshape(1, -1, 1), 0.0)
    mean = jnp.mean(y, axis=(0, 2), keepdims=True)
    var = jnp.mean((y - mean) ** 2, axis=(0, 2), keepdims=True)
    out = ((y - mean) / jnp.sqrt(var + eps)) * gamma.reshape(1, -1, 1) \
          + beta.reshape(1, -1, 1)
    return out.astype(x.dtype)


if __name__ == "__main__":
    key = jax.random.PRNGKey(0)
    k_x, k_w, k_b = jax.random.split(key, 3)

    B, C_in, C_out, L = 2, 16, 32, 64
    K, dilation = 3, 2

    x = jax.random.normal(k_x, (B, C_in, L), dtype=jnp.float32)
    weight = jax.random.normal(k_w, (C_out, C_in, K), dtype=jnp.float32) * 0.1
    bias = jax.random.normal(k_b, (C_out,), dtype=jnp.float32) * 0.1
    gamma = jnp.ones((C_out,), jnp.float32)    # fresh nn.BatchNorm1d init
    beta = jnp.zeros((C_out,), jnp.float32)

    out = tdnn_block(x, weight, bias, gamma, beta, kernel_size=K, dilation=dilation)
    out = jax.block_until_ready(out)

    ref = _reference_tdnn_block(x, weight, bias, gamma, beta,
                                kernel_size=K, dilation=dilation)
    assert out.shape == ref.shape, (out.shape, ref.shape)
    # Tolerance accounts for the single-pass bf16 MXU matmul (Precision.DEFAULT) vs the
    # full-f32 HIGHEST-precision reference; real bugs produce O(1) errors on the
    # unit-variance normalized output.
    max_err = float(jnp.max(jnp.abs(out - ref)))
    assert jnp.allclose(out, ref, rtol=2e-2, atol=5e-2), max_err

    print("KERNEL_OK")
</pallas_src>

<mosaic_0001>
module attributes {stable_mosaic.version = 11 : i64} {
  func.func @_stats_kernel(%arg0: i32, %arg1: memref<1x16x64xf32, #tpu.memory_space<vmem>>, %arg2: memref<32x48xf32, #tpu.memory_space<vmem>>, %arg3: memref<32x1xf32, #tpu.memory_space<vmem>>, %arg4: memref<1x32x1xf32, #tpu.memory_space<vmem>>, %arg5: memref<1x32x1xf32, #tpu.memory_space<vmem>>) attributes {dimension_semantics = [#tpu.dimension_semantics<parallel>], iteration_bounds = array<i64: 2>, scalar_prefetch = 0 : i64, scratch_operands = 0 : i64, tpu.core_type = #tpu.core_type<tc>, window_params = [{transform_indices = @transform_0, window_bounds = array<i64: 1, 16, 64>}, {pipeline_mode = #tpu.pipeline_mode<synchronous>, transform_indices = @transform_1, window_bounds = array<i64: 32, 48>}, {pipeline_mode = #tpu.pipeline_mode<synchronous>, transform_indices = @transform_2, window_bounds = array<i64: 32, 1>}, {transform_indices = @transform_3, window_bounds = array<i64: 1, 32, 1>}, {transform_indices = @transform_4, window_bounds = array<i64: 1, 32, 1>}]} {
    %c0 = arith.constant 0 : index
    %c0_0 = arith.constant 0 : index
    %c0_1 = arith.constant 0 : index
    %0 = vector.load %arg1[%c0, %c0_0, %c0_1] : memref<1x16x64xf32, #tpu.memory_space<vmem>>, vector<1x16x64xf32>
    %1 = vector.shape_cast %0 : vector<1x16x64xf32> to vector<16x64xf32>
    %c0_2 = arith.constant 0 : index
    %c0_3 = arith.constant 0 : index
    %2 = vector.load %arg2[%c0_2, %c0_3] : memref<32x48xf32, #tpu.memory_space<vmem>>, vector<32x48xf32>
    %c0_4 = arith.constant 0 : index
    %c0_5 = arith.constant 0 : index
    %3 = vector.load %arg3[%c0_4, %c0_5] : memref<32x1xf32, #tpu.memory_space<vmem>>, vector<32x1xf32>
    %4 = vector.extract_strided_slice %1 {offsets = [0, 2], sizes = [16, 1], strides = [1, 1]} : vector<16x64xf32> to vector<16x1xf32>
    %5 = vector.extract_strided_slice %1 {offsets = [0, 1], sizes = [16, 1], strides = [1, 1]} : vector<16x64xf32> to vector<16x1xf32>
    %6 = vector.extract_strided_slice %1 {offsets = [0, 62], sizes = [16, 1], strides = [1, 1]} : vector<16x64xf32> to vector<16x1xf32>
    %7 = vector.extract_strided_slice %1 {offsets = [0, 61], sizes = [16, 1], strides = [1, 1]} : vector<16x64xf32> to vector<16x1xf32>
    %8 = tpu.concatenate %4, %5, %1, %6, %7 in 1 : vector<16x1xf32>, vector<16x1xf32>, vector<16x64xf32>, vector<16x1xf32>, vector<16x1xf32> -> vector<16x68xf32>
    %9 = vector.extract_strided_slice %8 {offsets = [0, 0], sizes = [16, 64], strides = [1, 1]} : vector<16x68xf32> to vector<16x64xf32>
    %10 = vector.extract_strided_slice %8 {offsets = [0, 2], sizes = [16, 64], strides = [1, 1]} : vector<16x68xf32> to vector<16x64xf32>
    %11 = vector.extract_strided_slice %8 {offsets = [0, 4], sizes = [16, 64], strides = [1, 1]} : vector<16x68xf32> to vector<16x64xf32>
    %12 = tpu.concatenate %9, %10, %11 in 0 : vector<16x64xf32>, vector<16x64xf32>, vector<16x64xf32> -> vector<48x64xf32>
    %cst = arith.constant dense<0.000000e+00> : vector<32x64xf32>
    %13 = tpu.matmul %2, %12, %cst {dimension_numbers = #tpu.dot_dimension_numbers<[1], [0], [0], [1], [0, 0, 1, 1], [], []>} : vector<32x48xf32>, vector<48x64xf32>, vector<32x64xf32> -> vector<32x64xf32>
    %14 = vector.broadcast %3 : vector<32x1xf32> to vector<32x64xf32>
    %15 = arith.addf %13, %14 : vector<32x64xf32>
    %cst_6 = arith.constant 0.000000e+00 : f32
    %16 = vector.broadcast %cst_6 : f32 to vector<32x64xf32>
    %17 = arith.maximumf %15, %16 : vector<32x64xf32>
    %cst_7 = arith.constant dense<0.000000e+00> : vector<32xf32>
    %18 = vector.multi_reduction <add>, %17, %cst_7 [1] : vector<32x64xf32> to vector<32xf32>
    %19 = vector.shape_cast %18 : vector<32xf32> to vector<32x1xf32>
    %cst_8 = arith.constant 1.562500e-02 : f32
    %20 = vector.broadcast %cst_8 : f32 to vector<32x1xf32>
    %21 = arith.mulf %19, %20 : vector<32x1xf32>
    %22 = vector.broadcast %21 : vector<32x1xf32> to vector<32x64xf32>
    %23 = arith.subf %17, %22 : vector<32x64xf32>
    %c0_9 = arith.constant 0 : index
    %c0_10 = arith.constant 0 : index
    %c0_11 = arith.constant 0 : index
    %24 = vector.load %arg4[%c0_9, %c0_10, %c0_11] : memref<1x32x1xf32, #tpu.memory_space<vmem>>, vector<1x32x1xf32>
    %25 = vector.shape_cast %24 : vector<1x32x1xf32> to vector<32x1xf32>
    %26 = vector.shape_cast %19 : vector<32x1xf32> to vector<1x32x1xf32>
    tpu.vector_store %arg4[%c0_9, %c0_10, %c0_11], %26 {strides = array<i32>} : memref<1x32x1xf32, #tpu.memory_space<vmem>>, vector<1x32x1xf32>,
    %27 = arith.mulf %23, %23 : vector<32x64xf32>
    %cst_12 = arith.constant dense<0.000000e+00> : vector<32xf32>
    %28 = vector.multi_reduction <add>, %27, %cst_12 [1] : vector<32x64xf32> to vector<32xf32>
    %29 = vector.shape_cast %28 : vector<32xf32> to vector<32x1xf32>
    %c0_13 = arith.constant 0 : index
    %c0_14 = arith.constant 0 : index
    %c0_15 = arith.constant 0 : index
    %30 = vector.load %arg5[%c0_13, %c0_14, %c0_15] : memref<1x32x1xf32, #tpu.memory_space<vmem>>, vector<1x32x1xf32>
    %31 = vector.shape_cast %30 : vector<1x32x1xf32> to vector<32x1xf32>
    %32 = vector.shape_cast %29 : vector<32x1xf32> to vector<1x32x1xf32>
    tpu.vector_store %arg5[%c0_13, %c0_14, %c0_15], %32 {strides = array<i32>} : memref<1x32x1xf32, #tpu.memory_space<vmem>>, vector<1x32x1xf32>,
    return
  }
  func.func @transform_0(%arg0: i32) -> (i32, i32, i32) {
    %c0_i32 = arith.constant 0 : i32
    %c0_i32_0 = arith.constant 0 : i32
    %c0_i32_1 = arith.constant 0 : i32
    return %arg0, %c0_i32, %c0_i32_0 : i32, i32, i32
  }
  func.func @transform_1(%arg0: i32) -> (i32, i32) {
    %c0_i32 = arith.constant 0 : i32
    %c0_i32_0 = arith.constant 0 : i32
    %c0_i32_1 = arith.constant 0 : i32
    return %c0_i32, %c0_i32_0 : i32, i32
  }
  func.func @transform_2(%arg0: i32) -> (i32, i32) {
    %c0_i32 = arith.constant 0 : i32
    %c0_i32_0 = arith.constant 0 : i32
    %c0_i32_1 = arith.constant 0 : i32
    return %c0_i32, %c0_i32_0 : i32, i32
  }
  func.func @transform_3(%arg0: i32) -> (i32, i32, i32) {
    %c0_i32 = arith.constant 0 : i32
    %c0_i32_0 = arith.constant 0 : i32
    %c0_i32_1 = arith.constant 0 : i32
    return %arg0, %c0_i32, %c0_i32_0 : i32, i32, i32
  }
  func.func @transform_4(%arg0: i32) -> (i32, i32, i32) {
    %c0_i32 = arith.constant 0 : i32
    %c0_i32_0 = arith.constant 0 : i32
    %c0_i32_1 = arith.constant 0 : i32
    return %arg0, %c0_i32, %c0_i32_0 : i32, i32, i32
  }
}

</mosaic_0001>

<llo_original>
// kernel: tpu_custom_call.1
$region0: #{tpu_custom_call.1}
  #allocation0 [shape = 'u32[]', space=smem, size = 0x4, offset = 0x4, fixed_abs, tag = 'smem constant byte address 0x4 - core index']
  #allocation1 [shape = 'u32[72,128]{1,0:T(1,128)}', space=vmem, size = 0x9000, scoped, tag = 'internal scratch']
  %s0 = inlined_call_operand.vmem [shape: f32[2,16,64], index: 0, kind: input, shape index: {}]
  %s1 = inlined_call_operand.hbm [shape: f32[32,48], index: 1, kind: input, shape index: {}]
  %s2 = inlined_call_operand.vmem [shape: f32[32,1], index: 2, kind: input, shape index: {}]
  %s3 = inlined_call_operand.vmem [shape: f32[2,32,1], index: 3, kind: output, shape index: {0}]
  %s4 = inlined_call_operand.vmem [shape: f32[2,32,1], index: 4, kind: output, shape index: {1}]
  %5 = xla_tuple %s3, %s4
  %s6 = sld [smem:[#allocation0]]
  $region57: #{tpu_custom_call.1} parent=0
    _
  %s8 = ssub.s32 1, %s6
  %s9 = scalar_select 0, %s8, %s6
  $region1: #{tpu_custom_call.1} parent=0
    #allocation2 [shape = 'u8[16384]{0}', space=vmem, size = 0x4000, scoped, tag = 'input window, operand 1, single buffered']
    #allocation3 [shape = 's32[2]{0}', space=sflag, size = 0x8, scoped, tag = 'scoped memory for tpu_custom_call.1']
    %10 = vsyncpa [#allocation3], 0
    loop: start=0, step=1, limit=4
    $region2: #{tpu_custom_call.1} parent=1 // loop_pre_header
      _
    $region3: #{tpu_custom_call.1} parent=1 // loop_header
      %s12 = sphi 0, %s16
      %p13 = scmp.ge.s32.totalorder %s12, 4
      %s22 = sphi 0, %s24
      %s25 = sphi 0, %s22
      %s26 = sphi 0, %s25
      %s42 = sphi 0, %s26
      %s46 = sphi 0, %s46
      %s48 = sphi 0, %s46
      %s49 = sphi 0, %s48
      %s63 = sphi 0, %s49
      %s67 = sphi 0, %s67
      %s69 = sphi 0, %s67
      %s70 = sphi 0, %s69
      %s84 = sphi 0, %s70
      %s90 = sphi 0, %s92
      %s93 = sphi 0, %s90
      %s94 = sphi 0, %s93
      %s110 = sphi 0, %s94
      %s116 = sphi 0, %s118
      %s119 = sphi 0, %s116
      %s120 = sphi 0, %s119
      %s136 = sphi 0, %s120
    $region4: #{tpu_custom_call.1} parent=1 // loop_header_branch
      %15 = sbr.rel (%p13) target = $region8
    $region5: #{tpu_custom_call.1} parent=1 // loop_body
      %s17 = ssub.s32 %s12, 1
      %s18 = ssub.s32 %s12, 2
      %s19 = sadd.s32 %s12, 1
      %s20 = ssub.s32 %s12, %s19
      %p21 = scmp.eq.s32.totalorder %s20, 0
      %s23 = sadd.s32 %s22, 1
      %s24 = scalar_select %p21, %s22, %s23
      %p27 = pneg %p21
      %p28 = scmp.eq.s32.totalorder %s12, 1
      %p29 = por %p27, %p28
      %p30 = scmp.ne.s32.totalorder %s22, %s25
      %p31 = scmp.eq.s32.totalorder %s12, 0
      %p32 = por %p30, %p31
      %p33 = scmp.ne.s32.totalorder %s22, %s25
      %p34 = scmp.eq.s32.totalorder %s17, 1
      %p35 = por %p33, %p34
      %p36 = scmp.ne.s32.totalorder %s25, %s26
      %p37 = scmp.eq.s32.totalorder %s17, 0
      %p38 = por %p36, %p37
      %p39 = scmp.ne.s32.totalorder %s25, %s26
      %p40 = scmp.eq.s32.totalorder %s18, 1
      %p41 = por %p39, %p40
      %p43 = scmp.ne.s32.totalorder %s26, %s42
      %p44 = scmp.eq.s32.totalorder %s18, 0
      %p45 = por %p43, %p44
      %s47 = sadd.s32 %s46, 1
      %p50 = scmp.eq.s32.totalorder %s12, 1
      %p51 = scmp.ne.s32.totalorder %s46, %s48
      %p52 = scmp.eq.s32.totalorder %s12, 0
      %p53 = por %p51, %p52
      %p54 = scmp.ne.s32.totalorder %s46, %s48
      %p55 = scmp.eq.s32.totalorder %s17, 1
      %p56 = por %p54, %p55
      %p57 = scmp.ne.s32.totalorder %s48, %s49
      %p58 = scmp.eq.s32.totalorder %s17, 0
      %p59 = por %p57, %p58
      %p60 = scmp.ne.s32.totalorder %s48, %s49
      %p61 = scmp.eq.s32.totalorder %s18, 1
      %p62 = por %p60, %p61
      %p64 = scmp.ne.s32.totalorder %s49, %s63
      %p65 = scmp.eq.s32.totalorder %s18, 0
      %p66 = por %p64, %p65
      %s68 = sadd.s32 %s67, 1
      %p71 = scmp.eq.s32.totalorder %s12, 1
      %p72 = scmp.ne.s32.totalorder %s67, %s69
      %p73 = scmp.eq.s32.totalorder %s12, 0
      %p74 = por %p72, %p73
      %p75 = scmp.ne.s32.totalorder %s67, %s69
      %p76 = scmp.eq.s32.totalorder %s17, 1
      %p77 = por %p75, %p76
      %p78 = scmp.ne.s32.totalorder %s69, %s70
      %p79 = scmp.eq.s32.totalorder %s17, 0
      %p80 = por %p78, %p79
      %p81 = scmp.ne.s32.totalorder %s69, %s70
      %p82 = scmp.eq.s32.totalorder %s18, 1
      %p83 = por %p81, %p82
      %p85 = scmp.ne.s32.totalorder %s70, %s84
      %p86 = scmp.eq.s32.totalorder %s18, 0
      %p87 = por %p85, %p86
      %s88 = ssub.s32 %s12, %s19
      %p89 = scmp.eq.s32.totalorder %s88, 0
      %s91 = sadd.s32 %s90, 1
      %s92 = scalar_select %p89, %s90, %s91
      %p95 = pneg %p89
      %p96 = scmp.eq.s32.totalorder %s12, 1
      %p97 = por %p95, %p96
      %p98 = scmp.ne.s32.totalorder %s90, %s93
      %p99 = scmp.eq.s32.totalorder %s12, 0
      %p100 = por %p98, %p99
      %p101 = scmp.ne.s32.totalorder %s90, %s93
      %p102 = scmp.eq.s32.totalorder %s17, 1
      %p103 = por %p101, %p102
      %p104 = scmp.ne.s32.totalorder %s93, %s94
      %p105 = scmp.eq.s32.totalorder %s17, 0
      %p106 = por %p104, %p105
      %p107 = scmp.ne.s32.totalorder %s93, %s94
      %p108 = scmp.eq.s32.totalorder %s18, 1
      %p109 = por %p107, %p108
      %p111 = scmp.ne.s32.totalorder %s94, %s110
      %p112 = scmp.eq.s32.totalorder %s18, 0
      %p113 = por %p111, %p112
      %s114 = ssub.s32 %s12, %s19
      %p115 = scmp.eq.s32.totalorder %s114, 0
      %s117 = sadd.s32 %s116, 1
      %s118 = scalar_select %p115, %s116, %s117
      %p121 = pneg %p115
      %p122 = scmp.eq.s32.totalorder %s12, 1
      %p123 = por %p121, %p122
      %p124 = scmp.ne.s32.totalorder %s116, %s119
      %p125 = scmp.eq.s32.totalorder %s12, 0
      %p126 = por %p124, %p125
      %p127 = scmp.ne.s32.totalorder %s116, %s119
      %p128 = scmp.eq.s32.totalorder %s17, 1
      %p129 = por %p127, %p128
      %p130 = scmp.ne.s32.totalorder %s119, %s120
      %p131 = scmp.eq.s32.totalorder %s17, 0
      %p132 = por %p130, %p131
      %p133 = scmp.ne.s32.totalorder %s119, %s120
      %p134 = scmp.eq.s32.totalorder %s18, 1
      %p135 = por %p133, %p134
      %p137 = scmp.ne.s32.totalorder %s120, %s136
      %p138 = scmp.eq.s32.totalorder %s18, 0
      %p139 = por %p137, %p138
      %p140 = scmp.le.s32.totalorder 1, %s12
      %p141 = scmp.lt.s32.totalorder %s12, 3
      %p142 = pnand %p140, %p141
      %p143 = pneg %p142
      // Predicated region
      $region9: #{tpu_custom_call.1} parent=5 // pred_check
        _
      $region10: #{tpu_custom_call.1} parent=5 // pred_check_branch
        %145 = sbr.rel (%p142) target = $region12
      $region11: #{tpu_custom_call.1} parent=5 // pred_region
        %s146 = ssub.s32 %s12, 1
        // Predicated region
        $region13: #{tpu_custom_call.1} parent=11 // pred_check
          %p147 = pneg %p59
        $region14: #{tpu_custom_call.1} parent=11 // pred_check_branch
          %149 = sbr.rel (%p147) target = $region16
        $region15: #{tpu_custom_call.1} parent=11 // pred_region
          %151 = vsyncadd [#allocation3], 0
          %s152 = sshll.u32 %s1, 4
          %s153 = int_to_ptr.hbm [resolvable:$true] %s152
          %s154 = sshll.u32 [#allocation2], 4
          %s155 = int_to_ptr.vmem [resolvable:$true] %s154
          %160 = dma.hbm_to_vmem [thread:$0]  %s153, 512, %s155, [#allocation3], 128, 128, 8
        $region16: #{tpu_custom_call.1} parent=11 // pred_fallthru
          _
        // Predicated region
        $region17: #{tpu_custom_call.1} parent=11 // pred_check
          %p161 = pneg %p80
        $region18: #{tpu_custom_call.1} parent=11 // pred_check_branch
          %163 = sbr.rel (%p161) target = $region20
        $region19: #{tpu_custom_call.1} parent=11 // pred_region
          _
        $region20: #{tpu_custom_call.1} parent=11 // pred_fallthru
          _
      $region12: #{tpu_custom_call.1} parent=5 // pred_fallthru
        _
      %p164 = scmp.lt.s32.totalorder %s12, 2
      // Predicated region
      $region21: #{tpu_custom_call.1} parent=5 // pred_check
        %p165 = pneg %p164
      $region22: #{tpu_custom_call.1} parent=5 // pred_check_branch
        %167 = sbr.rel (%p165) target = $region24
      $region23: #{tpu_custom_call.1} parent=5 // pred_region
        // Predicated region
        $region25: #{tpu_custom_call.1} parent=23 // pred_check
          %p168 = pneg %p32
        $region26: #{tpu_custom_call.1} parent=23 // pred_check_branch
          %170 = sbr.rel (%p168) target = $region28
        $region27: #{tpu_custom_call.1} parent=23 // pred_region
          %p171 = scmp.lt.s32.totalorder %s12, 1
          %s172 = scalar_select %p171, %s12, 1
          %s173 = smul.addr %s172, 2
          %s174 = smul.addr %s173, 8
          %s175 = scalar_lea.vmem %s0, %s174
        $region28: #{tpu_custom_call.1} parent=23 // pred_fallthru
          _
      $region24: #{tpu_custom_call.1} parent=5 // pred_fallthru
        _
      %p176 = scmp.le.s32.totalorder 1, %s12
      %p177 = scmp.lt.s32.totalorder %s12, 3
      %p178 = pnand %p176, %p177
      %p179 = pneg %p178
      // Predicated region
      $region29: #{tpu_custom_call.1} parent=5 // pred_check
        _
      $region30: #{tpu_custom_call.1} parent=5 // pred_check_branch
        %181 = sbr.rel (%p178) target = $region32
      $region31: #{tpu_custom_call.1} parent=5 // pred_region
        %s182 = ssub.s32 %s12, 1
        // Predicated region
        $region33: #{tpu_custom_call.1} parent=31 // pred_check
          %p183 = pneg %p59
        $region34: #{tpu_custom_call.1} parent=31 // pred_check_branch
          %185 = sbr.rel (%p183) target = $region36
        $region35: #{tpu_custom_call.1} parent=31 // pred_region
          %187 = dma.done [#allocation3], 512
        $region36: #{tpu_custom_call.1} parent=31 // pred_fallthru
          _
        %p188 = scmp.lt.s32.totalorder %s17, 1
        %s189 = scalar_select %p188, %s17, 1
        %s190 = smul.addr %s189, 2
        %s191 = smul.addr %s190, 8
        %s192 = scalar_lea.vmem %s0, %s191
        %p193 = pneg %p38
        %p194 = pneg %p35
        %p195 = pneg %p59
        %p196 = pneg %p56
        %p197 = pneg %p80
        %p198 = pneg %p77
        %p199 = pneg %p106
        %p200 = pneg %p103
        %p201 = scmp.lt.s32.totalorder %s17, 1
        %s202 = scalar_select %p201, %s17, 1
        %s203 = smul.addr %s202, 4
        %s204 = smul.addr %s203, 8
        %s205 = scalar_lea.vmem %s3, %s204
        %p206 = pneg %p132
        %p207 = pneg %p129
        %p208 = scmp.lt.s32.totalorder %s17, 1
        %s209 = scalar_select %p208, %s17, 1
        %s210 = smul.addr %s209, 4
        %s211 = smul.addr %s210, 8
        %s212 = scalar_lea.vmem %s4, %s211
        %p213 = scmp.lt.s32.totalorder %s17, 1
        %s214 = scalar_select %p213, %s17, 1
        %s215 = smul.addr %s214, 2
        %s216 = smul.addr %s215, 8
        %s217 = scalar_lea.vmem %s0, %s216
        %p218 = scmp.lt.s32.totalorder %s17, 1
        %s219 = scalar_select %p218, %s17, 1
        %s220 = smul.addr %s219, 4
        %s221 = smul.addr %s220, 8
        %s222 = scalar_lea.vmem %s3, %s221
        %p223 = scmp.lt.s32.totalorder %s17, 1
        %s224 = scalar_select %p223, %s17, 1
        %s225 = smul.addr %s224, 4
        %s226 = smul.addr %s225, 8
        %s227 = scalar_lea.vmem %s4, %s226
        %v228 = vld [vmem:[%s217] sm:$0xff]
        %v229 = vld [vmem:[%s217 + $0x8] sm:$0xff]
        %v230 = vld [vmem:[#allocation2] sm:$0xff]
        %v231 = vld [vmem:[#allocation2 + $0x8] sm:$0xff]
        %v232 = vld [vmem:[#allocation2 + $0x10] sm:$0xff]
        %v233 = vld [vmem:[#allocation2 + $0x18] sm:$0xff]
        %v234 = vld [vmem:[%s2] sm:$0xff]
        %v235 = vld [vmem:[%s2 + $0x8] sm:$0xff]
        %v236 = vld [vmem:[%s2 + $0x10] sm:$0xff]
        %v237 = vld [vmem:[%s2 + $0x18] sm:$0xff]
        %240 = vrot.lane.b32.xlu0 %v228, 126
        %v241 = vpop.permute.xlu0 %240
        %242 = vrot.lane.b32.xlu0 %v229, 126
        %v243 = vpop.permute.xlu0 %242
        %246 = vrot.lane.b32.xlu0 %v228, 2
        %v247 = vpop.permute.xlu0 %246
        %248 = vrot.lane.b32.xlu0 %v229, 2
        %v249 = vpop.permute.xlu0 %248
        %252 = vrot.lane.b32.xlu0 %v228, 4
        %v253 = vpop.permute.xlu0 %252
        %254 = vrot.lane.b32.xlu0 %v229, 4
        %v255 = vpop.permute.xlu0 %254
        %258 = vrot.lane.b32.xlu0 %v228, 6
        %v259 = vpop.permute.xlu0 %258
        %260 = vrot.lane.b32.xlu0 %v229, 6
        %v261 = vpop.permute.xlu0 %260
        %vm264 = vcmask 7168
        %v265 = vsel %vm264, %v241, %v228
        %v266 = vsel %vm264, %v243, %v229
        %vm267 = vcmask 15360
        %v268 = vsel %vm267, %v265, %v247
        %v269 = vsel %vm267, %v266, %v249
        %vm270 = vcmask 539648
        %v271 = vsel %vm270, %v268, %v253
        %v272 = vsel %vm270, %v269, %v255
        %vm273 = vcmask 547840
        %v274 = vsel %vm273, %v271, %v259
        %v275 = vsel %vm273, %v272, %v261
        %278 = vrot.lane.b32.xlu0 %v274, 126
        %v279 = vpop.permute.xlu0 %278
        %280 = vrot.lane.b32.xlu0 %v275, 126
        %v281 = vpop.permute.xlu0 %280
        %284 = vrot.lane.b32.xlu0 %v274, 124
        %v285 = vpop.permute.xlu0 %284
        %286 = vrot.lane.b32.xlu0 %v275, 124
        %v287 = vpop.permute.xlu0 %286
        %291 = vset.pattern.permute.xlu0 0
        %292 = vperm.xlu0 %291, %v234
        %v293 = vpop.permute.xlu0 %292
        %296 = vset.pattern.permute.xlu0 0
        %297 = vperm.xlu0 %296, %v235
        %v298 = vpop.permute.xlu0 %297
        %301 = vset.pattern.permute.xlu0 0
        %302 = vperm.xlu0 %301, %v236
        %v303 = vpop.permute.xlu0 %302
        %306 = vset.pattern.permute.xlu0 0
        %307 = vperm.xlu0 %306, %v237
        %v308 = vpop.permute.xlu0 %307
        %vm310 = vcmask 392192
        %v312 = vsel %vm310, %v230, 0
        %v315 = vsel %vm310, %v231, 0
        %v318 = vsel %vm310, %v232, 0
        %v321 = vsel %vm310, %v233, 0
        %323 = vmatpush.msra.mxu0 0.0
        %324 = vmatpush.msra.mxu0 0.0
        %325 = vmatpush.msra.mxu0 0.0
        %326 = vmatpush.msra.mxu0 0.0
        %327 = vmatpush.msra.mxu0 0.0
        %328 = vmatpush.msra.mxu0 0.0
        %329 = vmatpush.msra.mxu0 0.0
        %330 = vmatpush.msra.mxu0 0.0
        %331 = vmatpush.msra.mxu0 0.0
        %332 = vmatpush.msra.mxu0 0.0
        %333 = vmatpush.msra.mxu0 %v287
        %334 = vmatpush.msra.mxu0 %v285
        %335 = vmatpush.msra.mxu0 %v281
        %336 = vmatpush.msra.mxu0 %v279
        %337 = vmatpush.msra.mxu0 %v275
        %338 = vmatpush.msra.mxu0 %v274
        %339 = vmatmul.f32.gmra.mxu0 %v312
        %v340 = vpop.f32.mrf.mxu0
        %v341 = vadd.f32 %v293, %v340
        %342 = vmatmul.f32.gmra.mxu0 %v315
        %v343 = vpop.f32.mrf.mxu0
        %v344 = vadd.f32 %v298, %v343
        %345 = vmatmul.f32.gmra.mxu0 %v318
        %v346 = vpop.f32.mrf.mxu0
        %v347 = vadd.f32 %v303, %v346
        %348 = vmatmul.f32.gmra.mxu0 %v321
        %v349 = vpop.f32.mrf.mxu0
        %v350 = vadd.f32 %v308, %v349
        %351 = vdwg.mxu0
        %v352 = vmax.f32 %v341, 0.0
        %v353 = vmax.f32 %v344, 0.0
        %v354 = vmax.f32 %v347, 0.0
        %v355 = vmax.f32 %v350, 0.0
        %vm356 = vcmask 523264
        %v357 = vsel %vm356, %v352, 0.0
        %358 = vadd.xlane.f32.xlu0 %v357
        %v359 = vpop.xlane.xlu0 %358
        %v360 = vsel %vm356, %v353, 0.0
        %361 = vadd.xlane.f32.xlu0 %v360
        %v362 = vpop.xlane.xlu0 %361
        %v363 = vsel %vm356, %v354, 0.0
        %364 = vadd.xlane.f32.xlu0 %v363
        %v365 = vpop.xlane.xlu0 %364
        %v366 = vsel %vm356, %v355, 0.0
        %367 = vadd.xlane.f32.xlu0 %v366
        %v368 = vpop.xlane.xlu0 %367
        %v369 = vmul.f32 %v359, 0.015625
        %v370 = vmul.f32 %v362, 0.015625
        %v371 = vmul.f32 %v365, 0.015625
        %v372 = vmul.f32 %v368, 0.015625
        %v373 = vsub.f32 %v352, %v369
        %v374 = vsub.f32 %v353, %v370
        %v375 = vsub.f32 %v354, %v371
        %v376 = vsub.f32 %v355, %v372
        %377 = vst.msk [vmem:[%s222] sm:$0xff] %vm264, %v359
        %378 = vst.msk [vmem:[%s222 + $0x8] sm:$0xff] %vm264, %v362
        %379 = vst.msk [vmem:[%s222 + $0x10] sm:$0xff] %vm264, %v365
        %380 = vst.msk [vmem:[%s222 + $0x18] sm:$0xff] %vm264, %v368
        %v381 = vmul.f32 %v373, %v373
        %v382 = vmul.f32 %v374, %v374
        %v383 = vmul.f32 %v375, %v375
        %v384 = vmul.f32 %v376, %v376
        %v385 = vsel %vm356, %v381, 0.0
        %386 = vadd.xlane.f32.xlu0 %v385
        %v387 = vpop.xlane.xlu0 %386
        %v388 = vsel %vm356, %v382, 0.0
        %389 = vadd.xlane.f32.xlu0 %v388
        %v390 = vpop.xlane.xlu0 %389
        %v391 = vsel %vm356, %v383, 0.0
        %392 = vadd.xlane.f32.xlu0 %v391
        %v393 = vpop.xlane.xlu0 %392
        %v394 = vsel %vm356, %v384, 0.0
        %395 = vadd.xlane.f32.xlu0 %v394
        %v396 = vpop.xlane.xlu0 %395
        %397 = vst.msk [vmem:[%s227] sm:$0xff] %vm264, %v387
        %398 = vst.msk [vmem:[%s227 + $0x8] sm:$0xff] %vm264, %v390
        %399 = vst.msk [vmem:[%s227 + $0x10] sm:$0xff] %vm264, %v393
        %400 = vst.msk [vmem:[%s227 + $0x18] sm:$0xff] %vm264, %v396
        %p401 = scmp.lt.s32.totalorder %s17, 1
        %s402 = scalar_select %p401, %s17, 1
        %s403 = smul.addr %s402, 4
        %s404 = smul.addr %s403, 8
        %s405 = scalar_lea.vmem %s3, %s404
        %p406 = scmp.lt.s32.totalorder %s17, 1
        %s407 = scalar_select %p406, %s17, 1
        %s408 = smul.addr %s407, 4
        %s409 = smul.addr %s408, 8
        %s410 = scalar_lea.vmem %s4, %s409
        // Predicated region
        $region37: #{tpu_custom_call.1} parent=31 // pred_check
          %p411 = pneg %p103
        $region38: #{tpu_custom_call.1} parent=31 // pred_check_branch
          %413 = sbr.rel (%p411) target = $region40
        $region39: #{tpu_custom_call.1} parent=31 // pred_region
          _
        $region40: #{tpu_custom_call.1} parent=31 // pred_fallthru
          _
        // Predicated region
        $region41: #{tpu_custom_call.1} parent=31 // pred_check
          %p414 = pneg %p129
        $region42: #{tpu_custom_call.1} parent=31 // pred_check_branch
          %416 = sbr.rel (%p414) target = $region44
        $region43: #{tpu_custom_call.1} parent=31 // pred_region
          _
        $region44: #{tpu_custom_call.1} parent=31 // pred_fallthru
          _
      $region32: #{tpu_custom_call.1} parent=5 // pred_fallthru
        _
      %p417 = scmp.le.s32.totalorder 2, %s12
      // Predicated region
      $region45: #{tpu_custom_call.1} parent=5 // pred_check
        %p418 = pneg %p417
      $region46: #{tpu_custom_call.1} parent=5 // pred_check_branch
        %420 = sbr.rel (%p418) target = $region48
      $region47: #{tpu_custom_call.1} parent=5 // pred_region
        %s421 = ssub.s32 %s12, 2
        // Predicated region
        $region49: #{tpu_custom_call.1} parent=47 // pred_check
          %p422 = pneg %p109
        $region50: #{tpu_custom_call.1} parent=47 // pred_check_branch
          %424 = sbr.rel (%p422) target = $region52
        $region51: #{tpu_custom_call.1} parent=47 // pred_region
          %p425 = scmp.lt.s32.totalorder %s18, 1
          %s426 = scalar_select %p425, %s18, 1
          %s427 = smul.addr %s426, 4
          %s428 = smul.addr %s427, 8
          %s429 = scalar_lea.vmem %s3, %s428
        $region52: #{tpu_custom_call.1} parent=47 // pred_fallthru
          _
        // Predicated region
        $region53: #{tpu_custom_call.1} parent=47 // pred_check
          %p430 = pneg %p135
        $region54: #{tpu_custom_call.1} parent=47 // pred_check_branch
          %432 = sbr.rel (%p430) target = $region56
        $region55: #{tpu_custom_call.1} parent=47 // pred_region
          %p433 = scmp.lt.s32.totalorder %s18, 1
          %s434 = scalar_select %p433, %s18, 1
          %s435 = smul.addr %s434, 4
          %s436 = smul.addr %s435, 8
          %s437 = scalar_lea.vmem %s4, %s436
        $region56: #{tpu_custom_call.1} parent=47 // pred_fallthru
          _
      $region48: #{tpu_custom_call.1} parent=5 // pred_fallthru
        _
    $region6: #{tpu_custom_call.1} parent=1 // loop_footer
      %s16 = sadd.s32 1, %s12
    $region7: #{tpu_custom_call.1} parent=1 // loop_footer_branch
      %11 = sbr.rel target = $region3
    $region8: #{tpu_custom_call.1} parent=1 // loop_exit
      _
    %438 = vsyncpa [#allocation3], 1
    %s439 = scalar_lea.sflag [#allocation3], 1
    %440 = vsyncpa %s439, 1

</llo_original>
